<compile_context>
chip_gen: v6e
topology: v6e:2x2x1
jax: 0.10.0
libtpu: 0.0.40
codegen_flags: <defaults>
</compile_context>

<pallas_src>
import functools

import jax
import jax.numpy as jnp
from jax import lax
from jax.experimental import pallas as pl
from jax.experimental.pallas import tpu as pltpu

BN_EPS = 1e-5
LANE = 128   # vreg lane width
SUB = 8      # vreg sublane count


def _ceil_to(x, m):
    return ((x + m - 1) // m) * m


# ----------------------------------------------------------------------------
# Fused kernel.  Grid = (phase, tile); both axes sequential ("arbitrary").
#   phase 0: h = relu(x@W1 + b1); accumulate sum(h), sum(h^2) into stats_ref;
#            on the last tile fold BatchNorm into scale/shift (ss_ref).
#   phase 1: recompute h, apply scale/shift, out = hn @ W2 + b2.
# ----------------------------------------------------------------------------
def _fused_mlp_kernel(x_ref, w1_ref, b1_ref, gb_ref, w2_ref, b2_ref, o_ref,
                      stats_ref, ss_ref, *, tb, b_real, n_tiles, mask_pad):
    phase = pl.program_id(0)
    i = pl.program_id(1)

    @pl.when(jnp.logical_and(phase == 0, i == 0))
    def _():
        stats_ref[...] = jnp.zeros_like(stats_ref)

    # Shared by both phases: first linear + ReLU, f32 accumulation on the MXU.
    # x / W1 are already in compute dtype (cast hoisted to the wrapper).
    h = jnp.dot(x_ref[...], w1_ref[...], preferred_element_type=jnp.float32)
    h = jnp.maximum(h + b1_ref[...], 0.0)

    @pl.when(phase == 0)
    def _():
        if mask_pad:
            # Batch-padding rows hold relu(b1) != 0; keep them out of stats.
            row = lax.broadcasted_iota(jnp.int32, h.shape, 0) + i * tb
            hm = jnp.where(row < b_real, h, 0.0)
        else:
            hm = h
        stats_ref[0:1, :] += jnp.sum(hm, axis=0, keepdims=True)        # sum h
        stats_ref[1:2, :] += jnp.sum(hm * hm, axis=0, keepdims=True)   # sum h^2

        @pl.when(i == n_tiles - 1)
        def _():
            inv_b = 1.0 / b_real
            mean = stats_ref[0:1, :] * inv_b
            var = jnp.maximum(stats_ref[1:2, :] * inv_b - mean * mean, 0.0)
            scale = gb_ref[0:1, :] * lax.rsqrt(var + BN_EPS)            # gamma
            ss_ref[0:1, :] = scale
            ss_ref[1:2, :] = gb_ref[1:2, :] - mean * scale              # beta

    @pl.when(phase == 1)
    def _():
        hn = h * ss_ref[0:1, :] + ss_ref[1:2, :]        # BN affine, f32 VPU
        out = jnp.dot(hn.astype(w2_ref.dtype), w2_ref[...],
                      preferred_element_type=jnp.float32) + b2_ref[...]
        o_ref[...] = out.astype(o_ref.dtype)


# ----------------------------------------------------------------------------
# One-time parameter preparation (pad hidden dim to a lane multiple, cast the
# matmul operands to compute_dtype).  Hoisted out of the per-call path.
# ----------------------------------------------------------------------------
def prepare_params(w1, b1, gamma, beta, w2, b2, *, compute_dtype=jnp.bfloat16):
    in_feats, hidden = w1.shape
    n_tasks = w2.shape[1]
    hp = _ceil_to(hidden, LANE)
    f32 = jnp.float32
    w1_p = jnp.zeros((in_feats, hp), compute_dtype).at[:, :hidden].set(
        w1.astype(compute_dtype))
    b1_p = jnp.zeros((1, hp), f32).at[:, :hidden].set(
        b1.reshape(1, hidden).astype(f32))
    gb_p = (jnp.zeros((2, hp), f32)
            .at[0, :hidden].set(gamma.reshape(hidden).astype(f32))
            .at[1, :hidden].set(beta.reshape(hidden).astype(f32)))
    w2_p = jnp.zeros((hp, n_tasks), compute_dtype).at[:hidden, :].set(
        w2.astype(compute_dtype))
    b2_p = b2.reshape(1, n_tasks).astype(f32)
    return w1_p, b1_p, gb_p, w2_p, b2_p


# ----------------------------------------------------------------------------
# Wrapper: batch tiling + the single fused pallas_call.
# ----------------------------------------------------------------------------
def mlp_predictor(feats, w1_p, b1_p, gb_p, w2_p, b2_p, *, tile_b=512):
    """feats: (B, in_feats) f32 -> (B, n_tasks). Params from prepare_params."""
    B, in_feats = feats.shape
    assert w1_p.shape[0] == in_feats
    hp = w1_p.shape[1]
    n_tasks = w2_p.shape[1]
    compute_dtype = w1_p.dtype
    f32 = jnp.float32

    tb = min(_ceil_to(tile_b, SUB), _ceil_to(B, SUB))
    n_tiles = pl.cdiv(B, tb)
    bp = n_tiles * tb

    # Stream x in compute dtype (halves input DMA bytes in bf16 mode).
    x = feats.astype(compute_dtype)
    if bp != B:
        x = jnp.pad(x, ((0, bp - B), (0, 0)))

    kernel = functools.partial(_fused_mlp_kernel, tb=tb, b_real=B,
                               n_tiles=n_tiles, mask_pad=(bp != B))

    out_pad = pl.pallas_call(
        kernel,
        grid=(2, n_tiles),
        in_specs=[
            pl.BlockSpec((tb, in_feats), lambda p, i: (i, 0)),   # x tile (K unpadded)
            pl.BlockSpec((in_feats, hp), lambda p, i: (0, 0)),   # W1 (resident)
            pl.BlockSpec((1, hp), lambda p, i: (0, 0)),          # b1
            pl.BlockSpec((2, hp), lambda p, i: (0, 0)),          # gamma/beta packed
            pl.BlockSpec((hp, n_tasks), lambda p, i: (0, 0)),    # W2 (resident)
            pl.BlockSpec((1, n_tasks), lambda p, i: (0, 0)),     # b2
        ],
        # Phase 0 parks on block 0 (never written -> no garbage writeback);
        # phase 1 walks the real output tiles.
        out_specs=pl.BlockSpec((tb, n_tasks), lambda p, i: (p * i, 0)),
        out_shape=jax.ShapeDtypeStruct((bp, n_tasks), f32),
        scratch_shapes=[pltpu.VMEM((2, hp), f32),    # BN stats: sum / sum-sq
                        pltpu.VMEM((2, hp), f32)],   # folded scale / shift
        compiler_params=pltpu.CompilerParams(
            dimension_semantics=("arbitrary", "arbitrary"),
            vmem_limit_bytes=32 * 1024 * 1024),
    )(x, w1_p, b1_p, gb_p, w2_p, b2_p)

    return out_pad[:B, :].astype(feats.dtype)


if __name__ == "__main__":
    # Pure-JAX reference (PyTorch training-mode BatchNorm1d semantics).
    def reference(feats, w1, b1, gamma, beta, w2, b2):
        h = jnp.maximum(feats @ w1 + b1, 0.0)
        mean = jnp.mean(h, axis=0, keepdims=True)
        var = jnp.mean((h - mean) ** 2, axis=0, keepdims=True)
        hn = (h - mean) * lax.rsqrt(var + BN_EPS) * gamma + beta
        return hn @ w2 + b2

    def make_case(key, B, in_feats, hidden, n_tasks):
        ks = jax.random.split(key, 7)
        lim1 = 1.0 / jnp.sqrt(in_feats)
        lim2 = 1.0 / jnp.sqrt(hidden)
        feats = jax.random.normal(ks[0], (B, in_feats), jnp.float32)
        w1 = jax.random.uniform(ks[1], (in_feats, hidden), jnp.float32, -lim1, lim1)
        b1 = jax.random.uniform(ks[2], (1, hidden), jnp.float32, -lim1, lim1)
        gamma = jax.random.uniform(ks[3], (1, hidden), jnp.float32, 0.5, 1.5)
        beta = jax.random.uniform(ks[4], (1, hidden), jnp.float32, -0.5, 0.5)
        w2 = jax.random.uniform(ks[5], (hidden, n_tasks), jnp.float32, -lim2, lim2)
        b2 = jax.random.uniform(ks[6], (1, n_tasks), jnp.float32, -lim2, lim2)
        return feats, (w1, b1, gamma, beta, w2, b2)

    key = jax.random.PRNGKey(0)
    k1, k2 = jax.random.split(key)

    # Case 1: gat_classifier defaults -> gnn_out_feats = 32 (last layer
    # agg='mean'), predictor input = 2*32 = 64, hidden = 128, n_tasks = 1.
    # tile_b=32 -> 2 batch tiles: exercises cross-tile BN stats + both phases.
    feats, params = make_case(k1, 64, 64, 128, 1)
    ref = reference(feats, *params)
    predict = jax.jit(functools.partial(mlp_predictor, tile_b=32))

    prep_f32 = prepare_params(*params, compute_dtype=jnp.float32)
    out = predict(feats, *prep_f32)
    jax.block_until_ready(out)
    assert out.shape == (64, 1)
    assert jnp.allclose(out, ref, atol=5e-4, rtol=5e-4), "f32 path mismatch"

    # bf16 MXU operands (default for prepare_params), f32 accumulation/BN math.
    prep_bf16 = prepare_params(*params)
    out_bf16 = predict(feats, *prep_bf16)
    jax.block_until_ready(out_bf16)
    assert jnp.allclose(out_bf16, ref, atol=1e-1, rtol=1e-1), "bf16 path mismatch"

    # Case 2: ragged shapes -> exercises batch padding/masking and hidden-dim
    # lane padding (B=50, 64 -> 96 -> 3, tile_b=16 -> 4 tiles).
    feats2, params2 = make_case(k2, 50, 64, 96, 3)
    ref2 = reference(feats2, *params2)
    prep2 = prepare_params(*params2, compute_dtype=jnp.float32)
    out2 = jax.jit(functools.partial(mlp_predictor, tile_b=16))(feats2, *prep2)
    jax.block_until_ready(out2)
    assert out2.shape == (50, 3)
    assert jnp.allclose(out2, ref2, atol=5e-4, rtol=5e-4), "ragged case mismatch"

    print("KERNEL_OK")
</pallas_src>

<mosaic_0001>
module attributes {stable_mosaic.version = 11 : i64} {
  func.func @_fused_mlp_kernel(%arg0: i32, %arg1: i32, %arg2: memref<32x64xf32, #tpu.memory_space<vmem>>, %arg3: memref<64x128xf32, #tpu.memory_space<vmem>>, %arg4: memref<1x128xf32, #tpu.memory_space<vmem>>, %arg5: memref<2x128xf32, #tpu.memory_space<vmem>>, %arg6: memref<128x1xf32, #tpu.memory_space<vmem>>, %arg7: memref<1x1xf32, #tpu.memory_space<vmem>>, %arg8: memref<32x1xf32, #tpu.memory_space<vmem>>, %arg9: memref<2x128xf32, #tpu.memory_space<vmem>>, %arg10: memref<2x128xf32, #tpu.memory_space<vmem>>) attributes {dimension_semantics = [#tpu.dimension_semantics<arbitrary>, #tpu.dimension_semantics<arbitrary>], iteration_bounds = array<i64: 2, 2>, scalar_prefetch = 0 : i64, scratch_operands = 2 : i64, tpu.core_type = #tpu.core_type<tc>, window_params = [{transform_indices = @transform_0, window_bounds = array<i64: 32, 64>}, {pipeline_mode = #tpu.pipeline_mode<synchronous>, transform_indices = @transform_1, window_bounds = array<i64: 64, 128>}, {pipeline_mode = #tpu.pipeline_mode<synchronous>, transform_indices = @transform_2, window_bounds = array<i64: 1, 128>}, {pipeline_mode = #tpu.pipeline_mode<synchronous>, transform_indices = @transform_3, window_bounds = array<i64: 2, 128>}, {pipeline_mode = #tpu.pipeline_mode<synchronous>, transform_indices = @transform_4, window_bounds = array<i64: 128, 1>}, {pipeline_mode = #tpu.pipeline_mode<synchronous>, transform_indices = @transform_5, window_bounds = array<i64: 1, 1>}, {transform_indices = @transform_6, window_bounds = array<i64: 32, 1>}]} {
    %c0_i32 = arith.constant 0 : i32
    %0 = arith.cmpi eq, %arg0, %c0_i32 : i32
    %c0_i32_0 = arith.constant 0 : i32
    %1 = arith.cmpi eq, %arg1, %c0_i32_0 : i32
    %2 = arith.andi %0, %1 : i1
    %3 = arith.extui %2 : i1 to i32
    %c0_i32_1 = arith.constant 0 : i32
    %4 = arith.cmpi ne, %3, %c0_i32_1 : i32
    scf.if %4 {
      %cst_11 = arith.constant 0.000000e+00 : f32
      %19 = vector.broadcast %cst_11 : f32 to vector<2x128xf32>
      %c0_12 = arith.constant 0 : index
      %c0_13 = arith.constant 0 : index
      %20 = vector.load %arg9[%c0_12, %c0_13] : memref<2x128xf32, #tpu.memory_space<vmem>>, vector<2x128xf32>
      tpu.vector_store %arg9[%c0_12, %c0_13], %19 {strides = array<i32>} : memref<2x128xf32, #tpu.memory_space<vmem>>, vector<2x128xf32>,
    } else {
    }
    %c0 = arith.constant 0 : index
    %c0_2 = arith.constant 0 : index
    %5 = vector.load %arg2[%c0, %c0_2] : memref<32x64xf32, #tpu.memory_space<vmem>>, vector<32x64xf32>
    %c0_3 = arith.constant 0 : index
    %c0_4 = arith.constant 0 : index
    %6 = vector.load %arg3[%c0_3, %c0_4] : memref<64x128xf32, #tpu.memory_space<vmem>>, vector<64x128xf32>
    %cst = arith.constant dense<0.000000e+00> : vector<32x128xf32>
    %7 = tpu.matmul %5, %6, %cst {dimension_numbers = #tpu.dot_dimension_numbers<[1], [0], [0], [1], [0, 0, 1, 1], [], []>} : vector<32x64xf32>, vector<64x128xf32>, vector<32x128xf32> -> vector<32x128xf32>
    %c0_5 = arith.constant 0 : index
    %c0_6 = arith.constant 0 : index
    %8 = vector.load %arg4[%c0_5, %c0_6] : memref<1x128xf32, #tpu.memory_space<vmem>>, vector<1x128xf32>
    %9 = vector.broadcast %8 : vector<1x128xf32> to vector<32x128xf32>
    %10 = arith.addf %7, %9 : vector<32x128xf32>
    %cst_7 = arith.constant 0.000000e+00 : f32
    %11 = vector.broadcast %cst_7 : f32 to vector<32x128xf32>
    %12 = arith.maximumf %10, %11 : vector<32x128xf32>
    %c0_i32_8 = arith.constant 0 : i32
    %13 = arith.cmpi eq, %arg0, %c0_i32_8 : i32
    %14 = arith.extui %13 : i1 to i32
    %c0_i32_9 = arith.constant 0 : i32
    %15 = arith.cmpi ne, %14, %c0_i32_9 : i32
    scf.if %15 {
      %c0_11 = arith.constant 0 : index
      %c0_12 = arith.constant 0 : index
      %19 = vector.load %arg9[%c0_11, %c0_12] : memref<2x128xf32, #tpu.memory_space<vmem>>, vector<1x128xf32>
      %cst_13 = arith.constant dense<0.000000e+00> : vector<128xf32>
      %20 = vector.multi_reduction <add>, %12, %cst_13 [0] : vector<32x128xf32> to vector<128xf32>
      %21 = vector.shape_cast %20 : vector<128xf32> to vector<1x128xf32>
      %22 = arith.addf %19, %21 : vector<1x128xf32>
      %c0_14 = arith.constant 0 : index
      %c0_15 = arith.constant 0 : index
      %23 = vector.load %arg9[%c0_14, %c0_15] : memref<2x128xf32, #tpu.memory_space<vmem>>, vector<1x128xf32>
      tpu.vector_store %arg9[%c0_14, %c0_15], %22 {strides = array<i32>} : memref<2x128xf32, #tpu.memory_space<vmem>>, vector<1x128xf32>,
      %c1 = arith.constant 1 : index
      %c0_16 = arith.constant 0 : index
      %24 = vector.load %arg9[%c1, %c0_16] : memref<2x128xf32, #tpu.memory_space<vmem>>, vector<1x128xf32>
      %25 = arith.mulf %12, %12 : vector<32x128xf32>
      %cst_17 = arith.constant dense<0.000000e+00> : vector<128xf32>
      %26 = vector.multi_reduction <add>, %25, %cst_17 [0] : vector<32x128xf32> to vector<128xf32>
      %27 = vector.shape_cast %26 : vector<128xf32> to vector<1x128xf32>
      %28 = arith.addf %24, %27 : vector<1x128xf32>
      %c1_18 = arith.constant 1 : index
      %c0_19 = arith.constant 0 : index
      %29 = vector.load %arg9[%c1_18, %c0_19] : memref<2x128xf32, #tpu.memory_space<vmem>>, vector<1x128xf32>
      tpu.vector_store %arg9[%c1_18, %c0_19], %28 {strides = array<i32>} : memref<2x128xf32, #tpu.memory_space<vmem>>, vector<1x128xf32>,
      %c1_i32_20 = arith.constant 1 : i32
      %30 = arith.cmpi eq, %arg1, %c1_i32_20 : i32
      %31 = arith.extui %30 : i1 to i32
      %c0_i32_21 = arith.constant 0 : i32
      %32 = arith.cmpi ne, %31, %c0_i32_21 : i32
      scf.if %32 {
        %c0_22 = arith.constant 0 : index
        %c0_23 = arith.constant 0 : index
        %33 = vector.load %arg9[%c0_22, %c0_23] : memref<2x128xf32, #tpu.memory_space<vmem>>, vector<1x128xf32>
        %cst_24 = arith.constant 1.562500e-02 : f32
        %34 = vector.broadcast %cst_24 : f32 to vector<1x128xf32>
        %35 = arith.mulf %33, %34 : vector<1x128xf32>
        %c1_25 = arith.constant 1 : index
        %c0_26 = arith.constant 0 : index
        %36 = vector.load %arg9[%c1_25, %c0_26] : memref<2x128xf32, #tpu.memory_space<vmem>>, vector<1x128xf32>
        %cst_27 = arith.constant 1.562500e-02 : f32
        %37 = vector.broadcast %cst_27 : f32 to vector<1x128xf32>
        %38 = arith.mulf %36, %37 : vector<1x128xf32>
        %39 = arith.mulf %35, %35 : vector<1x128xf32>
        %40 = arith.subf %38, %39 : vector<1x128xf32>
        %cst_28 = arith.constant 0.000000e+00 : f32
        %41 = vector.broadcast %cst_28 : f32 to vector<1x128xf32>
        %42 = arith.maximumf %40, %41 : vector<1x128xf32>
        %c0_29 = arith.constant 0 : index
        %c0_30 = arith.constant 0 : index
        %43 = vector.load %arg5[%c0_29, %c0_30] : memref<2x128xf32, #tpu.memory_space<vmem>>, vector<1x128xf32>
        %cst_31 = arith.constant 9.99999974E-6 : f32
        %44 = vector.broadcast %cst_31 : f32 to vector<1x128xf32>
        %45 = arith.addf %42, %44 : vector<1x128xf32>
        %46 = math.rsqrt %45 : vector<1x128xf32>
        %47 = arith.mulf %43, %46 : vector<1x128xf32>
        %c0_32 = arith.constant 0 : index
        %c0_33 = arith.constant 0 : index
        %48 = vector.load %arg10[%c0_32, %c0_33] : memref<2x128xf32, #tpu.memory_space<vmem>>, vector<1x128xf32>
        tpu.vector_store %arg10[%c0_32, %c0_33], %47 {strides = array<i32>} : memref<2x128xf32, #tpu.memory_space<vmem>>, vector<1x128xf32>,
        %c1_34 = arith.constant 1 : index
        %c0_35 = arith.constant 0 : index
        %49 = vector.load %arg5[%c1_34, %c0_35] : memref<2x128xf32, #tpu.memory_space<vmem>>, vector<1x128xf32>
        %50 = arith.mulf %35, %47 : vector<1x128xf32>
        %51 = arith.subf %49, %50 : vector<1x128xf32>
        %c1_36 = arith.constant 1 : index
        %c0_37 = arith.constant 0 : index
        %52 = vector.load %arg10[%c1_36, %c0_37] : memref<2x128xf32, #tpu.memory_space<vmem>>, vector<1x128xf32>
        tpu.vector_store %arg10[%c1_36, %c0_37], %51 {strides = array<i32>} : memref<2x128xf32, #tpu.memory_space<vmem>>, vector<1x128xf32>,
      } else {
      }
    } else {
    }
    %c1_i32 = arith.constant 1 : i32
    %16 = arith.cmpi eq, %arg0, %c1_i32 : i32
    %17 = arith.extui %16 : i1 to i32
    %c0_i32_10 = arith.constant 0 : i32
    %18 = arith.cmpi ne, %17, %c0_i32_10 : i32
    scf.if %18 {
      %c0_11 = arith.constant 0 : index
      %c0_12 = arith.constant 0 : index
      %19 = vector.load %arg10[%c0_11, %c0_12] : memref<2x128xf32, #tpu.memory_space<vmem>>, vector<1x128xf32>
      %20 = vector.broadcast %19 : vector<1x128xf32> to vector<32x128xf32>
      %21 = arith.mulf %12, %20 : vector<32x128xf32>
      %c1 = arith.constant 1 : index
      %c0_13 = arith.constant 0 : index
      %22 = vector.load %arg10[%c1, %c0_13] : memref<2x128xf32, #tpu.memory_space<vmem>>, vector<1x128xf32>
      %23 = vector.broadcast %22 : vector<1x128xf32> to vector<32x128xf32>
      %24 = arith.addf %21, %23 : vector<32x128xf32>
      %c0_14 = arith.constant 0 : index
      %c0_15 = arith.constant 0 : index
      %25 = vector.load %arg6[%c0_14, %c0_15] : memref<128x1xf32, #tpu.memory_space<vmem>>, vector<128x1xf32>
      %cst_16 = arith.constant dense<0.000000e+00> : vector<32x1xf32>
      %26 = tpu.matmul %24, %25, %cst_16 {dimension_numbers = #tpu.dot_dimension_numbers<[1], [0], [0], [1], [0, 0, 1, 1], [], []>} : vector<32x128xf32>, vector<128x1xf32>, vector<32x1xf32> -> vector<32x1xf32>
      %c0_17 = arith.constant 0 : index
      %c0_18 = arith.constant 0 : index
      %27 = vector.load %arg7[%c0_17, %c0_18] : memref<1x1xf32, #tpu.memory_space<vmem>>, vector<1x1xf32>
      %28 = vector.broadcast %27 : vector<1x1xf32> to vector<32x1xf32>
      %29 = arith.addf %26, %28 : vector<32x1xf32>
      %c0_19 = arith.constant 0 : index
      %c0_20 = arith.constant 0 : index
      %30 = vector.load %arg8[%c0_19, %c0_20] : memref<32x1xf32, #tpu.memory_space<vmem>>, vector<32x1xf32>
      tpu.vector_store %arg8[%c0_19, %c0_20], %29 {strides = array<i32>} : memref<32x1xf32, #tpu.memory_space<vmem>>, vector<32x1xf32>,
    } else {
    }
    return
  }
  func.func @transform_0(%arg0: i32, %arg1: i32) -> (i32, i32) {
    %c0_i32 = arith.constant 0 : i32
    %c0_i32_0 = arith.constant 0 : i32
    return %arg1, %c0_i32 : i32, i32
  }
  func.func @transform_1(%arg0: i32, %arg1: i32) -> (i32, i32) {
    %c0_i32 = arith.constant 0 : i32
    %c0_i32_0 = arith.constant 0 : i32
    %c0_i32_1 = arith.constant 0 : i32
    return %c0_i32, %c0_i32_0 : i32, i32
  }
  func.func @transform_2(%arg0: i32, %arg1: i32) -> (i32, i32) {
    %c0_i32 = arith.constant 0 : i32
    %c0_i32_0 = arith.constant 0 : i32
    %c0_i32_1 = arith.constant 0 : i32
    return %c0_i32, %c0_i32_0 : i32, i32
  }
  func.func @transform_3(%arg0: i32, %arg1: i32) -> (i32, i32) {
    %c0_i32 = arith.constant 0 : i32
    %c0_i32_0 = arith.constant 0 : i32
    %c0_i32_1 = arith.constant 0 : i32
    return %c0_i32, %c0_i32_0 : i32, i32
  }
  func.func @transform_4(%arg0: i32, %arg1: i32) -> (i32, i32) {
    %c0_i32 = arith.constant 0 : i32
    %c0_i32_0 = arith.constant 0 : i32
    %c0_i32_1 = arith.constant 0 : i32
    return %c0_i32, %c0_i32_0 : i32, i32
  }
  func.func @transform_5(%arg0: i32, %arg1: i32) -> (i32, i32) {
    %c0_i32 = arith.constant 0 : i32
    %c0_i32_0 = arith.constant 0 : i32
    %c0_i32_1 = arith.constant 0 : i32
    return %c0_i32, %c0_i32_0 : i32, i32
  }
  func.func @transform_6(%arg0: i32, %arg1: i32) -> (i32, i32) {
    %0 = arith.muli %arg0, %arg1 : i32
    %c0_i32 = arith.constant 0 : i32
    %c0_i32_0 = arith.constant 0 : i32
    return %0, %c0_i32 : i32, i32
  }
}

</mosaic_0001>

<llo_original>
// kernel: mlp_predictor.1
$region0: #{mlp_predictor.1}
  #allocation0 [shape = 'u32[]', space=smem, size = 0x4, offset = 0x4, fixed_abs, tag = 'smem constant byte address 0x4 - core index']
  #allocation1 [shape = 'u32[144,128]{1,0:T(1,128)}', space=vmem, size = 0x12000, scoped, tag = 'internal scratch']
  #allocation2 [shape = 'f32[2,128]{1,0:T(2,128)}', space=vmem, size = 0x400, scoped, tag = 'scratch operand']
  #allocation3 [shape = 'f32[2,128]{1,0:T(2,128)}', space=vmem, size = 0x400, scoped, tag = 'scratch operand']
  #allocation4 [shape = 'f32[1,1]{1,0:T(1,128)S(1)}', space=vmem, size = 0x200, scoped, tag = 'scoped memory for mlp_predictor.1']
  %s0 = inlined_call_operand.vmem [shape: f32[64,64], index: 0, kind: input, shape index: {}]
  %s1 = inlined_call_operand.vmem [shape: f32[64,128], index: 1, kind: input, shape index: {}]
  %s2 = inlined_call_operand.vmem [shape: f32[1,128], index: 2, kind: input, shape index: {}]
  %s3 = inlined_call_operand.vmem [shape: f32[2,128], index: 3, kind: input, shape index: {}]
  %s4 = inlined_call_operand.vmem [shape: f32[128,1], index: 4, kind: input, shape index: {}]
  %s5 = inlined_call_operand.<no memory space> [shape: f32[1,1], index: 5, kind: input, shape index: {}]
  %s6 = inlined_call_operand.vmem [shape: f32[64,1], index: 6, kind: output, shape index: {}]
  %s7 = sld [smem:[#allocation0]]
  $region73: #{mlp_predictor.1} parent=0
    _
  %s9 = ssub.s32 1, %s7
  %s10 = scalar_select 0, %s9, %s7
  %v11 = vstv %s5
  %12 = vst [vmem:[#allocation4] sm:$0x1] %v11
  loop: start=0, step=1, limit=6
  $region2: #{mlp_predictor.1} parent=0 // loop_pre_header
    _
  $region3: #{mlp_predictor.1} parent=0 // loop_header
    %s14 = sphi 0, %s18
    %p15 = scmp.ge.s32.totalorder %s14, 6
    %s21 = sphi 0, %s33
    %s22 = sphi 0, %s29
    %s23 = sphi 0, %s21
    %s24 = sphi 0, %s22
    %s25 = sphi 0, %s23
    %s26 = sphi 0, %s24
    %s36 = sphi 0, %s38
    %s39 = sphi 0, %s36
    %s40 = sphi 0, %s39
    %s56 = sphi 0, %s40
    %s60 = sphi 0, %s60
    %s62 = sphi 0, %s60
    %s63 = sphi 0, %s62
    %s77 = sphi 0, %s63
    %s81 = sphi 0, %s81
    %s83 = sphi 0, %s81
    %s84 = sphi 0, %s83
    %s98 = sphi 0, %s84
    %s102 = sphi 0, %s102
    %s104 = sphi 0, %s102
    %s105 = sphi 0, %s104
    %s119 = sphi 0, %s105
    %s123 = sphi 0, %s123
    %s125 = sphi 0, %s123
    %s126 = sphi 0, %s125
    %s140 = sphi 0, %s126
    %s144 = sphi 0, %s144
    %s146 = sphi 0, %s144
    %s147 = sphi 0, %s146
    %s161 = sphi 0, %s147
    %s169 = sphi 0, %s171
    %s172 = sphi 0, %s169
    %s173 = sphi 0, %s172
    %s189 = sphi 0, %s173
  $region4: #{mlp_predictor.1} parent=0 // loop_header_branch
    %17 = sbr.rel (%p15) target = $region8
  $region5: #{mlp_predictor.1} parent=0 // loop_body
    %s19 = ssub.s32 %s14, 1
    %s20 = ssub.s32 %s14, 2
    %s27 = sadd.s32 1, %s22
    %p28 = scmp.ge.s32.totalorder %s27, 2
    %s29 = scalar_select %p28, 0, %s27
    %s30 = sadd.s32 1, %s21
    %s31 = scalar_select %p28, %s30, %s21
    %p32 = scmp.ge.s32.totalorder %s31, 2
    %s33 = scalar_select %p32, 0, %s31
    %s34 = ssub.s32 %s22, %s29
    %p35 = scmp.eq.s32.totalorder %s34, 0
    %s37 = sadd.s32 %s36, 1
    %s38 = scalar_select %p35, %s36, %s37
    %p41 = pneg %p35
    %p42 = scmp.eq.s32.totalorder %s14, 3
    %p43 = por %p41, %p42
    %p44 = scmp.ne.s32.totalorder %s36, %s39
    %p45 = scmp.eq.s32.totalorder %s14, 0
    %p46 = por %p44, %p45
    %p47 = scmp.ne.s32.totalorder %s36, %s39
    %p48 = scmp.eq.s32.totalorder %s19, 3
    %p49 = por %p47, %p48
    %p50 = scmp.ne.s32.totalorder %s39, %s40
    %p51 = scmp.eq.s32.totalorder %s19, 0
    %p52 = por %p50, %p51
    %p53 = scmp.ne.s32.totalorder %s39, %s40
    %p54 = scmp.eq.s32.totalorder %s20, 3
    %p55 = por %p53, %p54
    %p57 = scmp.ne.s32.totalorder %s40, %s56
    %p58 = scmp.eq.s32.totalorder %s20, 0
    %p59 = por %p57, %p58
    %s61 = sadd.s32 %s60, 1
    %p64 = scmp.eq.s32.totalorder %s14, 3
    %p65 = scmp.ne.s32.totalorder %s60, %s62
    %p66 = scmp.eq.s32.totalorder %s14, 0
    %p67 = por %p65, %p66
    %p68 = scmp.ne.s32.totalorder %s60, %s62
    %p69 = scmp.eq.s32.totalorder %s19, 3
    %p70 = por %p68, %p69
    %p71 = scmp.ne.s32.totalorder %s62, %s63
    %p72 = scmp.eq.s32.totalorder %s19, 0
    %p73 = por %p71, %p72
    %p74 = scmp.ne.s32.totalorder %s62, %s63
    %p75 = scmp.eq.s32.totalorder %s20, 3
    %p76 = por %p74, %p75
    %p78 = scmp.ne.s32.totalorder %s63, %s77
    %p79 = scmp.eq.s32.totalorder %s20, 0
    %p80 = por %p78, %p79
    %s82 = sadd.s32 %s81, 1
    %p85 = scmp.eq.s32.totalorder %s14, 3
    %p86 = scmp.ne.s32.totalorder %s81, %s83
    %p87 = scmp.eq.s32.totalorder %s14, 0
    %p88 = por %p86, %p87
    %p89 = scmp.ne.s32.totalorder %s81, %s83
    %p90 = scmp.eq.s32.totalorder %s19, 3
    %p91 = por %p89, %p90
    %p92 = scmp.ne.s32.totalorder %s83, %s84
    %p93 = scmp.eq.s32.totalorder %s19, 0
    %p94 = por %p92, %p93
    %p95 = scmp.ne.s32.totalorder %s83, %s84
    %p96 = scmp.eq.s32.totalorder %s20, 3
    %p97 = por %p95, %p96
    %p99 = scmp.ne.s32.totalorder %s84, %s98
    %p100 = scmp.eq.s32.totalorder %s20, 0
    %p101 = por %p99, %p100
    %s103 = sadd.s32 %s102, 1
    %p106 = scmp.eq.s32.totalorder %s14, 3
    %p107 = scmp.ne.s32.totalorder %s102, %s104
    %p108 = scmp.eq.s32.totalorder %s14, 0
    %p109 = por %p107, %p108
    %p110 = scmp.ne.s32.totalorder %s102, %s104
    %p111 = scmp.eq.s32.totalorder %s19, 3
    %p112 = por %p110, %p111
    %p113 = scmp.ne.s32.totalorder %s104, %s105
    %p114 = scmp.eq.s32.totalorder %s19, 0
    %p115 = por %p113, %p114
    %p116 = scmp.ne.s32.totalorder %s104, %s105
    %p117 = scmp.eq.s32.totalorder %s20, 3
    %p118 = por %p116, %p117
    %p120 = scmp.ne.s32.totalorder %s105, %s119
    %p121 = scmp.eq.s32.totalorder %s20, 0
    %p122 = por %p120, %p121
    %s124 = sadd.s32 %s123, 1
    %p127 = scmp.eq.s32.totalorder %s14, 3
    %p128 = scmp.ne.s32.totalorder %s123, %s125
    %p129 = scmp.eq.s32.totalorder %s14, 0
    %p130 = por %p128, %p129
    %p131 = scmp.ne.s32.totalorder %s123, %s125
    %p132 = scmp.eq.s32.totalorder %s19, 3
    %p133 = por %p131, %p132
    %p134 = scmp.ne.s32.totalorder %s125, %s126
    %p135 = scmp.eq.s32.totalorder %s19, 0
    %p136 = por %p134, %p135
    %p137 = scmp.ne.s32.totalorder %s125, %s126
    %p138 = scmp.eq.s32.totalorder %s20, 3
    %p139 = por %p137, %p138
    %p141 = scmp.ne.s32.totalorder %s126, %s140
    %p142 = scmp.eq.s32.totalorder %s20, 0
    %p143 = por %p141, %p142
    %s145 = sadd.s32 %s144, 1
    %p148 = scmp.eq.s32.totalorder %s14, 3
    %p149 = scmp.ne.s32.totalorder %s144, %s146
    %p150 = scmp.eq.s32.totalorder %s14, 0
    %p151 = por %p149, %p150
    %p152 = scmp.ne.s32.totalorder %s144, %s146
    %p153 = scmp.eq.s32.totalorder %s19, 3
    %p154 = por %p152, %p153
    %p155 = scmp.ne.s32.totalorder %s146, %s147
    %p156 = scmp.eq.s32.totalorder %s19, 0
    %p157 = por %p155, %p156
    %p158 = scmp.ne.s32.totalorder %s146, %s147
    %p159 = scmp.eq.s32.totalorder %s20, 3
    %p160 = por %p158, %p159
    %p162 = scmp.ne.s32.totalorder %s147, %s161
    %p163 = scmp.eq.s32.totalorder %s20, 0
    %p164 = por %p162, %p163
    %s165 = smul.u32 %s21, %s22
    %s166 = smul.u32 %s33, %s29
    %s167 = ssub.s32 %s165, %s166
    %p168 = scmp.eq.s32.totalorder %s167, 0
    %s170 = sadd.s32 %s169, 1
    %s171 = scalar_select %p168, %s169, %s170
    %p174 = pneg %p168
    %p175 = scmp.eq.s32.totalorder %s14, 3
    %p176 = por %p174, %p175
    %p177 = scmp.ne.s32.totalorder %s169, %s172
    %p178 = scmp.eq.s32.totalorder %s14, 0
    %p179 = por %p177, %p178
    %p180 = scmp.ne.s32.totalorder %s169, %s172
    %p181 = scmp.eq.s32.totalorder %s19, 3
    %p182 = por %p180, %p181
    %p183 = scmp.ne.s32.totalorder %s172, %s173
    %p184 = scmp.eq.s32.totalorder %s19, 0
    %p185 = por %p183, %p184
    %p186 = scmp.ne.s32.totalorder %s172, %s173
    %p187 = scmp.eq.s32.totalorder %s20, 3
    %p188 = por %p186, %p187
    %p190 = scmp.ne.s32.totalorder %s173, %s189
    %p191 = scmp.eq.s32.totalorder %s20, 0
    %p192 = por %p190, %p191
    %p193 = scmp.le.s32.totalorder 1, %s14
    %p194 = scmp.lt.s32.totalorder %s14, 5
    %p195 = pnand %p193, %p194
    %p196 = pneg %p195
    // Predicated region
    $region9: #{mlp_predictor.1} parent=5 // pred_check
      _
    $region10: #{mlp_predictor.1} parent=5 // pred_check_branch
      %198 = sbr.rel (%p195) target = $region12
    $region11: #{mlp_predictor.1} parent=5 // pred_region
      %s199 = ssub.s32 %s14, 1
      // Predicated region
      $region13: #{mlp_predictor.1} parent=11 // pred_check
        %p200 = pneg %p73
      $region14: #{mlp_predictor.1} parent=11 // pred_check_branch
        %202 = sbr.rel (%p200) target = $region16
      $region15: #{mlp_predictor.1} parent=11 // pred_region
        _
      $region16: #{mlp_predictor.1} parent=11 // pred_fallthru
        _
      // Predicated region
      $region17: #{mlp_predictor.1} parent=11 // pred_check
        %p203 = pneg %p94
      $region18: #{mlp_predictor.1} parent=11 // pred_check_branch
        %205 = sbr.rel (%p203) target = $region20
      $region19: #{mlp_predictor.1} parent=11 // pred_region
        _
      $region20: #{mlp_predictor.1} parent=11 // pred_fallthru
        _
      // Predicated region
      $region21: #{mlp_predictor.1} parent=11 // pred_check
        %p206 = pneg %p115
      $region22: #{mlp_predictor.1} parent=11 // pred_check_branch
        %208 = sbr.rel (%p206) target = $region24
      $region23: #{mlp_predictor.1} parent=11 // pred_region
        _
      $region24: #{mlp_predictor.1} parent=11 // pred_fallthru
        _
      // Predicated region
      $region25: #{mlp_predictor.1} parent=11 // pred_check
        %p209 = pneg %p136
      $region26: #{mlp_predictor.1} parent=11 // pred_check_branch
        %211 = sbr.rel (%p209) target = $region28
      $region27: #{mlp_predictor.1} parent=11 // pred_region
        _
      $region28: #{mlp_predictor.1} parent=11 // pred_fallthru
        _
      // Predicated region
      $region29: #{mlp_predictor.1} parent=11 // pred_check
        %p212 = pneg %p157
      $region30: #{mlp_predictor.1} parent=11 // pred_check_branch
        %214 = sbr.rel (%p212) target = $region32
      $region31: #{mlp_predictor.1} parent=11 // pred_region
        _
      $region32: #{mlp_predictor.1} parent=11 // pred_fallthru
        _
    $region12: #{mlp_predictor.1} parent=5 // pred_fallthru
      _
    %p215 = scmp.lt.s32.totalorder %s14, 4
    // Predicated region
    $region33: #{mlp_predictor.1} parent=5 // pred_check
      %p216 = pneg %p215
    $region34: #{mlp_predictor.1} parent=5 // pred_check_branch
      %218 = sbr.rel (%p216) target = $region36
    $region35: #{mlp_predictor.1} parent=5 // pred_region
      // Predicated region
      $region37: #{mlp_predictor.1} parent=35 // pred_check
        %p219 = pneg %p46
      $region38: #{mlp_predictor.1} parent=35 // pred_check_branch
        %221 = sbr.rel (%p219) target = $region40
      $region39: #{mlp_predictor.1} parent=35 // pred_region
        %s222 = smul.u32 4, %s22
        %p223 = scmp.lt.s32.totalorder %s222, 7
        %s224 = scalar_select %p223, %s222, 7
        %s225 = smul.addr %s224, 8
        %s226 = scalar_lea.vmem %s0, %s225
        %s227 = smul.u32 4, %s22
      $region40: #{mlp_predictor.1} parent=35 // pred_fallthru
        _
    $region36: #{mlp_predictor.1} parent=5 // pred_fallthru
      _
    %p228 = scmp.le.s32.totalorder 1, %s14
    %p229 = scmp.lt.s32.totalorder %s14, 5
    %p230 = pnand %p228, %p229
    %p231 = pneg %p230
    // Predicated region
    $region41: #{mlp_predictor.1} parent=5 // pred_check
      _
    $region42: #{mlp_predictor.1} parent=5 // pred_check_branch
      %233 = sbr.rel (%p230) target = $region44
    $region43: #{mlp_predictor.1} parent=5 // pred_region
      %s234 = ssub.s32 %s14, 1
      %s235 = smul.u32 4, %s24
      %p236 = scmp.lt.s32.totalorder %s235, 7
      %s237 = scalar_select %p236, %s235, 7
      %s238 = smul.addr %s237, 8
      %s239 = scalar_lea.vmem %s0, %s238
      %p240 = pneg %p52
      %p241 = pneg %p49
      %p242 = pneg %p73
      %p243 = pneg %p70
      %p244 = pneg %p94
      %p245 = pneg %p91
      %p246 = pneg %p115
      %p247 = pneg %p112
      %p248 = pneg %p136
      %p249 = pneg %p133
      %p250 = pneg %p157
      %p251 = pneg %p154
      %p252 = pneg %p185
      %p253 = pneg %p182
      %s254 = smul.u32 %s23, %s24
      %s255 = smul.u32 4, %s254
      %p256 = scmp.lt.s32.totalorder %s255, 7
      %s257 = scalar_select %p256, %s255, 7
      %s258 = smul.addr %s257, 8
      %s259 = scalar_lea.vmem %s6, %s258
      %s260 = smul.u32 4, %s24
      %p261 = scmp.lt.s32.totalorder %s260, 7
      %s262 = scalar_select %p261, %s260, 7
      %s263 = smul.addr %s262, 8
      %s264 = scalar_lea.vmem %s0, %s263
      %s265 = smul.u32 4, %s24
      %s266 = smul.u32 %s23, %s24
      %s267 = smul.u32 4, %s266
      %p268 = scmp.lt.s32.totalorder %s267, 7
      %s269 = scalar_select %p268, %s267, 7
      %s270 = smul.addr %s269, 8
      %s271 = scalar_lea.vmem %s6, %s270
      %s272 = smul.u32 %s23, %s24
      %s273 = smul.u32 4, %s272
      %p274 = scmp.eq.s32.totalorder %s23, 0
      %p275 = scmp.eq.s32.totalorder %s24, 0
      %p276 = pnand %p274, %p275
      %p277 = pneg %p276
      // Predicated region
      $region45: #{mlp_predictor.1} parent=43 // pred_check
        _
      $region46: #{mlp_predictor.1} parent=43 // pred_check_branch
        %279 = sbr.rel (%p276) target = $region48
      $region47: #{mlp_predictor.1} parent=43 // pred_region
        %280 = vst [vmem:[#allocation2] sm:$0x3] 0.0
      $region48: #{mlp_predictor.1} parent=43 // pred_fallthru
        _
      %v281 = vld [vmem:[%s264] sm:$0xff]
      %v282 = vld [vmem:[%s264 + $0x8] sm:$0xff]
      %v283 = vld [vmem:[%s264 + $0x10] sm:$0xff]
      %v284 = vld [vmem:[%s264 + $0x18] sm:$0xff]
      %v285 = vld [vmem:[%s1] sm:$0xff]
      %v286 = vld [vmem:[%s1 + $0x8] sm:$0xff]
      %v287 = vld [vmem:[%s1 + $0x10] sm:$0xff]
      %v288 = vld [vmem:[%s1 + $0x18] sm:$0xff]
      %v289 = vld [vmem:[%s1 + $0x20] sm:$0xff]
      %v290 = vld [vmem:[%s1 + $0x28] sm:$0xff]
      %v291 = vld [vmem:[%s1 + $0x30] sm:$0xff]
      %v292 = vld [vmem:[%s1 + $0x38] sm:$0xff]
      %v293 = vld [vmem:[%s2] sm:$0x1]
      %v295 = vlaneseq
      %v296 = vshrl.u32 %v295, 7
      %v297 = vsub.s32 0, %v296
      %v298 = vrot.slane %v293, %v297
      %vm300 = vcmask 523264
      %v302 = vsel %vm300, %v281, 0
      %v305 = vsel %vm300, %v282, 0
      %v308 = vsel %vm300, %v283, 0
      %v311 = vsel %vm300, %v284, 0
      %313 = vmatprep.subr.mxu0 0.0
      %314 = vmatpush1.msra.mxu0 0.0
      %315 = vmatprep.subr.mxu0 0.0
      %316 = vmatpush1.msra.mxu0 0.0
      %317 = vmatprep.subr.mxu0 0.0
      %318 = vmatpush1.msra.mxu0 0.0
      %319 = vmatprep.subr.mxu0 0.0
      %320 = vmatpush1.msra.mxu0 0.0
      %321 = vmatprep.subr.mxu0 0.0
      %322 = vmatpush1.msra.mxu0 0.0
      %323 = vmatprep.subr.mxu0 0.0
      %324 = vmatpush1.msra.mxu0 0.0
      %325 = vmatprep.subr.mxu0 0.0
      %326 = vmatpush1.msra.mxu0 0.0
      %327 = vmatprep.subr.mxu0 0.0
      %328 = vmatpush1.msra.mxu0 0.0
      %329 = vmatprep.subr.mxu0 0.0
      %330 = vmatpush1.msra.mxu0 %v292
      %331 = vmatprep.subr.mxu0 0.0
      %332 = vmatpush1.msra.mxu0 %v291
      %333 = vmatprep.subr.mxu0 0.0
      %334 = vmatpush1.msra.mxu0 %v290
      %335 = vmatprep.subr.mxu0 0.0
      %336 = vmatpush1.msra.mxu0 %v289
      %337 = vmatprep.subr.mxu0 0.0
      %338 = vmatpush1.msra.mxu0 %v288
      %339 = vmatprep.subr.mxu0 0.0
      %340 = vmatpush1.msra.mxu0 %v287
      %341 = vmatprep.subr.mxu0 0.0
      %342 = vmatpush1.msra.mxu0 %v286
      %343 = vmatprep.subr.mxu0 0.0
      %344 = vmatpush1.msra.mxu0 %v285
      %345 = vmatprep.subr.mxu0 0.0
      %346 = vmatpush2.msra.mxu0 0.0
      %347 = vmatprep.subr.mxu0 0.0
      %348 = vmatpush2.msra.mxu0 0.0
      %349 = vmatprep.subr.mxu0 0.0
      %350 = vmatpush2.msra.mxu0 0.0
      %351 = vmatprep.subr.mxu0 0.0
      %352 = vmatpush2.msra.mxu0 0.0
      %353 = vmatprep.subr.mxu0 0.0
      %354 = vmatpush2.msra.mxu0 0.0
      %355 = vmatprep.subr.mxu0 0.0
      %356 = vmatpush2.msra.mxu0 0.0
      %357 = vmatprep.subr.mxu0 0.0
      %358 = vmatpush2.msra.mxu0 0.0
      %359 = vmatprep.subr.mxu0 0.0
      %360 = vmatpush2.msra.mxu0 0.0
      %361 = vmatprep.subr.mxu0 0.0
      %362 = vmatpush2.msra.mxu0 0.0
      %363 = vmatprep.subr.mxu0 0.0
      %364 = vmatpush2.msra.mxu0 0.0
      %365 = vmatprep.subr.mxu0 0.0
      %366 = vmatpush2.msra.mxu0 0.0
      %367 = vmatprep.subr.mxu0 0.0
      %368 = vmatpush2.msra.mxu0 0.0
      %369 = vmatprep.subr.mxu0 0.0
      %370 = vmatpush2.msra.mxu0 0.0
      %371 = vmatprep.subr.mxu0 0.0
      %372 = vmatpush2.msra.mxu0 0.0
      %373 = vmatprep.subr.mxu0 0.0
      %374 = vmatpush2.msra.mxu0 0.0
      %375 = vmatprep.subr.mxu0 0.0
      %376 = vmatpush2.msra.mxu0 0.0
      %377 = vmatprep.mubr.f32.mxu0 0.0
      %378 = vmatmul.mubr.f32.gmra.mxu0 %v302
      %v379 = vpop.f32.mrf.mxu0
      %v380 = vadd.f32 %v298, %v379
      %v381 = vpop.f32.mrf.mxu0
      %382 = vmatprep.mubr.f32.mxu0 0.0
      %383 = vmatmul.mubr.f32.gmra.mxu0 %v305
      %v384 = vpop.f32.mrf.mxu0
      %v385 = vadd.f32 %v298, %v384
      %v386 = vpop.f32.mrf.mxu0
      %387 = vmatprep.mubr.f32.mxu0 0.0
      %388 = vmatmul.mubr.f32.gmra.mxu0 %v308
      %v389 = vpop.f32.mrf.mxu0
      %v390 = vadd.f32 %v298, %v389
      %v391 = vpop.f32.mrf.mxu0
      %392 = vmatprep.mubr.f32.mxu0 0.0
      %393 = vmatmul.mubr.f32.gmra.mxu0 %v311
      %v394 = vpop.f32.mrf.mxu0
      %v395 = vadd.f32 %v298, %v394
      %v396 = vpop.f32.mrf.mxu0
      %397 = vdwg.mxu0
      %v398 = vmax.f32 %v380, 0.0
      %v399 = vmax.f32 %v385, 0.0
      %v400 = vmax.f32 %v390, 0.0
      %v401 = vmax.f32 %v395, 0.0
      // Predicated region
      $region49: #{mlp_predictor.1} parent=43 // pred_check
        %p402 = pneg %p274
      $region50: #{mlp_predictor.1} parent=43 // pred_check_branch
        %404 = sbr.rel (%p402) target = $region52
      $region51: #{mlp_predictor.1} parent=43 // pred_region
        %v405 = vld [vmem:[#allocation2] sm:$0x1]
        %v406 = vadd.f32 %v398, %v399
        %v407 = vadd.f32 %v406, %v400
        %v408 = vadd.f32 %v407, %v401
        %v409 = vrot.slane %v408, 4
        %v410 = vadd.f32 %v408, %v409
        %v411 = vrot.slane %v410, 2
        %v412 = vadd.f32 %v410, %v411
        %v413 = vrot.slane %v412, 1
        %v414 = vadd.f32 %v412, %v413
        %v415 = vadd.f32 %v405, %v414
        %416 = vst [vmem:[#allocation2] sm:$0x1] %v415
        %v417 = vld [vmem:[#allocation2 + $0x1] sm:$0x1]
        %v418 = vmul.f32 %v398, %v398
        %v419 = vmul.f32 %v399, %v399
        %v420 = vmul.f32 %v400, %v400
        %v421 = vmul.f32 %v401, %v401
        %v422 = vadd.f32 %v418, %v419
        %v423 = vadd.f32 %v422, %v420
        %v424 = vadd.f32 %v423, %v421
        %v425 = vrot.slane %v424, 4
        %v426 = vadd.f32 %v424, %v425
        %v427 = vrot.slane %v426, 2
        %v428 = vadd.f32 %v426, %v427
        %v429 = vrot.slane %v428, 1
        %v430 = vadd.f32 %v428, %v429
        %v431 = vadd.f32 %v417, %v430
        %432 = vst [vmem:[#allocation2 + $0x1] sm:$0x1] %v431
        %p433 = scmp.eq.s32.totalorder %s24, 1
        // Predicated region
        $region53: #{mlp_predictor.1} parent=51 // pred_check
          %p434 = pneg %p433
        $region54: #{mlp_predictor.1} parent=51 // pred_check_branch
          %436 = sbr.rel (%p434) target = $region56
        $region55: #{mlp_predictor.1} parent=51 // pred_region
          %v437 = vld [vmem:[#allocation2] sm:$0x1]
          %v438 = vmul.f32 %v437, 0.015625
          %v439 = vld [vmem:[#allocation2 + $0x1] sm:$0x1]
          %v440 = vmul.f32 %v439, 0.015625
          %v441 = vmul.f32 %v438, %v438
          %v442 = vsub.f32 %v440, %v441
          %v443 = vmax.f32 %v442, 0.0
          %v444 = vld [vmem:[%s3] sm:$0x1]
          %v445 = vadd.f32 %v443, 1e-05
          %v446 = vrsqrt.pop %v445
          %v447 = vmul.f32 %v444, %v446
          %448 = vst [vmem:[#allocation3] sm:$0x1] %v447
          %v449 = vld [vmem:[%s3 + $0x1] sm:$0x1]
          %v450 = vmul.f32 %v438, %v447
          %v451 = vsub.f32 %v449, %v450
          %452 = vst [vmem:[#allocation3 + $0x1] sm:$0x1] %v451
        $region56: #{mlp_predictor.1} parent=51 // pred_fallthru
          _
      $region52: #{mlp_predictor.1} parent=43 // pred_fallthru
        _
      %p453 = scmp.eq.s32.totalorder %s23, 1
      // Predicated region
      $region57: #{mlp_predictor.1} parent=43 // pred_check
        %p454 = pneg %p453
      $region58: #{mlp_predictor.1} parent=43 // pred_check_branch
        %456 = sbr.rel (%p454) target = $region60
      $region59: #{mlp_predictor.1} parent=43 // pred_region
        %v457 = vld [vmem:[#allocation3] sm:$0x1]
        %v458 = vlaneseq
        %v459 = vshrl.u32 %v458, 7
        %v460 = vsub.s32 0, %v459
        %v461 = vrot.slane %v457, %v460
        %v462 = vmul.f32 %v398, %v461
        %v463 = vmul.f32 %v399, %v461
        %v464 = vmul.f32 %v400, %v461
        %v465 = vmul.f32 %v401, %v461
        %v466 = vld [vmem:[#allocation3 + $0x1] sm:$0x1]
        %v467 = vlaneseq
        %v468 = vshrl.u32 %v467, 7
        %v469 = vsub.s32 0, %v468
        %v470 = vrot.slane %v466, %v469
        %v471 = vadd.f32 %v462, %v470
        %v472 = vadd.f32 %v463, %v470
        %v473 = vadd.f32 %v464, %v470
        %v474 = vadd.f32 %v465, %v470
        %v475 = vld [vmem:[%s4] sm:$0xff]
        %v476 = vld [vmem:[%s4 + $0x8] sm:$0xff]
        %v477 = vld [vmem:[%s4 + $0x10] sm:$0xff]
        %v478 = vld [vmem:[%s4 + $0x18] sm:$0xff]
        %v479 = vld [vmem:[%s4 + $0x20] sm:$0xff]
        %v480 = vld [vmem:[%s4 + $0x28] sm:$0xff]
        %v481 = vld [vmem:[%s4 + $0x30] sm:$0xff]
        %v482 = vld [vmem:[%s4 + $0x38] sm:$0xff]
        %v483 = vld [vmem:[%s4 + $0x40] sm:$0xff]
        %v484 = vld [vmem:[%s4 + $0x48] sm:$0xff]
        %v485 = vld [vmem:[%s4 + $0x50] sm:$0xff]
        %v486 = vld [vmem:[%s4 + $0x58] sm:$0xff]
        %v487 = vld [vmem:[%s4 + $0x60] sm:$0xff]
        %v488 = vld [vmem:[%s4 + $0x68] sm:$0xff]
        %v489 = vld [vmem:[%s4 + $0x70] sm:$0xff]
        %v490 = vld [vmem:[%s4 + $0x78] sm:$0xff]
        %v491 = vld [vmem:[#allocation4] sm:$0x1]
        %v493 = vlaneseq
        %v494 = vshrl.u32 %v493, 7
        %v495 = vsub.s32 0, %v494
        %v496 = vrot.slane %v491, %v495
        %498 = vmatprep.subr.mxu0 0.0
        %499 = vmatpush1.msra.mxu0 %v490
        %500 = vmatprep.subr.mxu0 0.0
        %501 = vmatpush1.msra.mxu0 %v489
        %502 = vmatprep.subr.mxu0 0.0
        %503 = vmatpush1.msra.mxu0 %v488
        %504 = vmatprep.subr.mxu0 0.0
        %505 = vmatpush1.msra.mxu0 %v487
        %506 = vmatprep.subr.mxu0 0.0
        %507 = vmatpush1.msra.mxu0 %v486
        %508 = vmatprep.subr.mxu0 0.0
        %509 = vmatpush1.msra.mxu0 %v485
        %510 = vmatprep.subr.mxu0 0.0
        %511 = vmatpush1.msra.mxu0 %v484
        %512 = vmatprep.subr.mxu0 0.0
        %513 = vmatpush1.msra.mxu0 %v483
        %514 = vmatprep.subr.mxu0 0.0
        %515 = vmatpush1.msra.mxu0 %v482
        %516 = vmatprep.subr.mxu0 0.0
        %517 = vmatpush1.msra.mxu0 %v481
        %518 = vmatprep.subr.mxu0 0.0
        %519 = vmatpush1.msra.mxu0 %v480
        %520 = vmatprep.subr.mxu0 0.0
        %521 = vmatpush1.msra.mxu0 %v479
        %522 = vmatprep.subr.mxu0 0.0
        %523 = vmatpush1.msra.mxu0 %v478
        %524 = vmatprep.subr.mxu0 0.0
        %525 = vmatpush1.msra.mxu0 %v477
        %526 = vmatprep.subr.mxu0 0.0
        %527 = vmatpush1.msra.mxu0 %v476
        %528 = vmatprep.subr.mxu0 0.0
        %529 = vmatpush1.msra.mxu0 %v475
        %530 = vmatprep.subr.mxu0 0.0
        %531 = vmatpush2.msra.mxu0 0.0
        %532 = vmatprep.subr.mxu0 0.0
        %533 = vmatpush2.msra.mxu0 0.0
        %534 = vmatprep.subr.mxu0 0.0
        %535 = vmatpush2.msra.mxu0 0.0
        %536 = vmatprep.subr.mxu0 0.0
        %537 = vmatpush2.msra.mxu0 0.0
        %538 = vmatprep.subr.mxu0 0.0
        %539 = vmatpush2.msra.mxu0 0.0
        %540 = vmatprep.subr.mxu0 0.0
        %541 = vmatpush2.msra.mxu0 0.0
        %542 = vmatprep.subr.mxu0 0.0
        %543 = vmatpush2.msra.mxu0 0.0
        %544 = vmatprep.subr.mxu0 0.0
        %545 = vmatpush2.msra.mxu0 0.0
        %546 = vmatprep.subr.mxu0 0.0
        %547 = vmatpush2.msra.mxu0 0.0
        %548 = vmatprep.subr.mxu0 0.0
        %549 = vmatpush2.msra.mxu0 0.0
        %550 = vmatprep.subr.mxu0 0.0
        %551 = vmatpush2.msra.mxu0 0.0
        %552 = vmatprep.subr.mxu0 0.0
        %553 = vmatpush2.msra.mxu0 0.0
        %554 = vmatprep.subr.mxu0 0.0
        %555 = vmatpush2.msra.mxu0 0.0
        %556 = vmatprep.subr.mxu0 0.0
        %557 = vmatpush2.msra.mxu0 0.0
        %558 = vmatprep.subr.mxu0 0.0
        %559 = vmatpush2.msra.mxu0 0.0
        %560 = vmatprep.subr.mxu0 0.0
        %561 = vmatpush2.msra.mxu0 0.0
        %562 = vmatprep.mubr.f32.mxu0 0.0
        %563 = vmatmul.mubr.f32.gmra.mxu0 %v471
        %v564 = vpop.f32.mrf.mxu0
        %v565 = vadd.f32 %v496, %v564
        %v566 = vpop.f32.mrf.mxu0
        %567 = vmatprep.mubr.f32.mxu0 0.0
        %568 = vmatmul.mubr.f32.gmra.mxu0 %v472
        %v569 = vpop.f32.mrf.mxu0
        %v570 = vadd.f32 %v496, %v569
        %v571 = vpop.f32.mrf.mxu0
        %572 = vmatprep.mubr.f32.mxu0 0.0
        %573 = vmatmul.mubr.f32.gmra.mxu0 %v473
        %v574 = vpop.f32.mrf.mxu0
        %v575 = vadd.f32 %v496, %v574
        %v576 = vpop.f32.mrf.mxu0
        %577 = vmatprep.mubr.f32.mxu0 0.0
        %578 = vmatmul.mubr.f32.gmra.mxu0 %v474
        %v579 = vpop.f32.mrf.mxu0
        %v580 = vadd.f32 %v496, %v579
        %v581 = vpop.f32.mrf.mxu0
        %582 = vdwg.mxu0
        %vm583 = vcmask 7168
        %584 = vst.msk [vmem:[%s271] sm:$0xff] %vm583, %v565
        %585 = vst.msk [vmem:[%s271 + $0x8] sm:$0xff] %vm583, %v570
        %586 = vst.msk [vmem:[%s271 + $0x10] sm:$0xff] %vm583, %v575
        %587 = vst.msk [vmem:[%s271 + $0x18] sm:$0xff] %vm583, %v580
      $region60: #{mlp_predictor.1} parent=43 // pred_fallthru
        _
      %s588 = smul.u32 %s23, %s24
      %s589 = smul.u32 4, %s588
      %p590 = scmp.lt.s32.totalorder %s589, 7
      %s591 = scalar_select %p590, %s589, 7
      %s592 = smul.addr %s591, 8
      %s593 = scalar_lea.vmem %s6, %s592
      // Predicated region
      $region61: #{mlp_predictor.1} parent=43 // pred_check
        %p594 = pneg %p182
      $region62: #{mlp_predictor.1} parent=43 // pred_check_branch
        %596 = sbr.rel (%p594) target = $region64
      $region63: #{mlp_predictor.1} parent=43 // pred_region
        %s597 = smul.u32 %s23, %s24
        %s598 = smul.u32 4, %s597
      $region64: #{mlp_predictor.1} parent=43 // pred_fallthru
        _
    $region44: #{mlp_predictor.1} parent=5 // pred_fallthru
      _
    %p599 = scmp.le.s32.totalorder 2, %s14
    // Predicated region
    $region65: #{mlp_predictor.1} parent=5 // pred_check
      %p600 = pneg %p599
    $region66: #{mlp_predictor.1} parent=5 // pred_check_branch
      %602 = sbr.rel (%p600) target = $region68
    $region67: #{mlp_predictor.1} parent=5 // pred_region
      %s603 = ssub.s32 %s14, 2
      // Predicated region
      $region69: #{mlp_predictor.1} parent=67 // pred_check
        %p604 = pneg %p188
      $region70: #{mlp_predictor.1} parent=67 // pred_check_branch
        %606 = sbr.rel (%p604) target = $region72
      $region71: #{mlp_predictor.1} parent=67 // pred_region
        %s607 = smul.u32 %s25, %s26
        %s608 = smul.u32 4, %s607
        %p609 = scmp.lt.s32.totalorder %s608, 7
        %s610 = scalar_select %p609, %s608, 7
        %s611 = smul.addr %s610, 8
        %s612 = scalar_lea.vmem %s6, %s611
      $region72: #{mlp_predictor.1} parent=67 // pred_fallthru
        _
    $region68: #{mlp_predictor.1} parent=5 // pred_fallthru
      _
  $region6: #{mlp_predictor.1} parent=0 // loop_footer
    %s18 = sadd.s32 1, %s14
  $region7: #{mlp_predictor.1} parent=0 // loop_footer_branch
    %13 = sbr.rel target = $region3
  $region8: #{mlp_predictor.1} parent=0 // loop_exit
    _

</llo_original>
